<compile_context>
chip_gen: v6e
topology: v6e:2x2x1
jax: 0.10.0
libtpu: 0.0.40
codegen_flags: <defaults>
</compile_context>

<pallas_src>
import functools
import math

import jax
import jax.numpy as jnp
from jax import lax
from jax.experimental import pallas as pl
from jax.experimental.pallas import tpu as pltpu


# ----------------------------------------------------------------------------
# Single fused kernel:
#   projection(+PE row 0) -> BatchNorm1d (affine folded into w1/b1) ->
#   Linear -> ReLU -> Linear(H->1, lane-dense (1,B) result) -> sigmoid -> *6-3
# ----------------------------------------------------------------------------
def _hgcn_fused_kernel(x_ref, wp_ref, w1_ref, pk_ref, o_ref, *, dfus, hdim):
    # x_ref : (B, Din_tot) concatenated s=0 features of the three modalities
    # wp_ref: (Din_tot, dfus) block-diagonal fused projection weight
    # w1_ref: (dfus, hdim) classifier linear_1 weight with BN gamma folded in
    # pk_ref: (4, 128) packed small params:
    #   row0[:dfus] = proj bias + PE[s=0]   row1[:hdim] = folded linear_1 bias
    #   row2[:hdim] = linear_2 weight row   row3[0]     = linear_2 bias
    x = x_ref[...]

    b_proj = pk_ref[0:1, 0:dfus]        # static ref slices: zero-cost views
    b1 = pk_ref[1:2, 0:hdim]
    w2 = pk_ref[2:3, 0:hdim]
    b2 = pk_ref[3:4, 0:1]

    # Fused tri-modal projection + positional embedding (timestep 0).
    f = jnp.dot(x, wp_ref[...], preferred_element_type=jnp.float32) + b_proj

    # TODO(synk): HypergraphConv, Graph_Attention_Union (MGAT) and
    # TransformerEncoder are not defined in the provided source; they are
    # skipped (identity) rather than faked, so `f` is the fusion feature.

    # BatchNorm1d (training-mode batch stats, biased var, eps=1e-5).
    # gamma/beta are folded into w1/b1 at fusion time, so only normalization
    # remains; the centered tensor is reused for the variance (single pass).
    mean = jnp.mean(f, axis=0, keepdims=True)
    centered = f - mean
    var = jnp.mean(centered * centered, axis=0, keepdims=True)
    normed = centered * lax.rsqrt(var + 1e-5)
    # dropout -> identity (deterministic / eval semantics)

    # Linear 1 (+ folded BN affine) + ReLU.
    y1 = jnp.dot(normed, w1_ref[...], preferred_element_type=jnp.float32) + b1
    y1 = jnp.maximum(y1, 0.0)                                   # (B, hdim)

    # Linear 2 (hdim -> 1) as (1,H) x (B,H)^T -> (1,B): the result is
    # lane-dense (batch on the lane axis), so the output store is unmasked.
    y2 = lax.dot_general(w2, y1,
                         dimension_numbers=(((1,), (1,)), ((), ())),
                         preferred_element_type=jnp.float32) + b2   # (1, B)

    # sigmoid on the EUP: exp + approx reciprocal (free slot vs. VPU).
    sig = pl.reciprocal(1.0 + jnp.exp(-y2), approx=True)
    o_ref[...] = (sig * 6.0 - 3.0).astype(o_ref.dtype)          # output_range/shift


def hgcn_fused_forward(x0, fused):
    """x0: (B, Din_l+Din_a+Din_v) first-timestep features of all modalities."""
    B, din = x0.shape
    dfus = fused["w_proj"].shape[1]
    hdim = fused["w1"].shape[1]
    vmem = pl.BlockSpec(memory_space=pltpu.MemorySpace.VMEM)

    flops = 2 * B * din * dfus + 2 * B * dfus * hdim + 2 * B * hdim + 10 * B * dfus
    bytes_accessed = 4 * (x0.size + fused["w_proj"].size + fused["w1"].size
                          + fused["packed"].size + B)

    # TODO(synk): for production batch sizes, grid over B (TB multiple of 8,
    # dimension_semantics=("parallel",)) with precomputed/running BN stats (or
    # a two-pass stats scheme); kept whole-batch here so the batch statistics
    # exactly match PyTorch BatchNorm1d training-mode semantics.
    out_row = pl.pallas_call(
        functools.partial(_hgcn_fused_kernel, dfus=dfus, hdim=hdim),
        out_shape=jax.ShapeDtypeStruct((1, B), jnp.float32),
        in_specs=[vmem] * 4,
        out_specs=vmem,
        cost_estimate=pl.CostEstimate(
            flops=flops,
            transcendentals=2 * B + dfus,
            bytes_accessed=bytes_accessed),
    )(x0, fused["w_proj"], fused["w1"], fused["packed"])
    return out_row.reshape(B, 1)


# ----------------------------------------------------------------------------
# Parameter setup & one-time parameter fusion
# ----------------------------------------------------------------------------
def sinusoid_pe(max_len, d_model):
    position = jnp.arange(max_len, dtype=jnp.float32)[:, None]
    div_term = jnp.exp(
        jnp.arange(0, d_model, 2, dtype=jnp.float32)
        * (-math.log(10000.0) / d_model)
    )
    pe = jnp.zeros((max_len, d_model), dtype=jnp.float32)
    pe = pe.at[:, 0::2].set(jnp.sin(position * div_term))
    if d_model % 2 == 0:
        pe = pe.at[:, 1::2].set(jnp.cos(position * div_term))
    else:
        pe = pe.at[:, 1::2].set(jnp.cos(position * div_term[:-1]))
    return pe


def init_linear(key, din, dout):
    kw, kb = jax.random.split(key)
    bound = 1.0 / math.sqrt(din)
    w = jax.random.uniform(kw, (din, dout), jnp.float32, -bound, bound)
    b = jax.random.uniform(kb, (1, dout), jnp.float32, -bound, bound)
    return w, b


def _block_diag3(w1, w2, w3):
    d1i, d1o = w1.shape
    d2i, d2o = w2.shape
    d3i, d3o = w3.shape
    W = jnp.zeros((d1i + d2i + d3i, d1o + d2o + d3o), jnp.float32)
    W = W.at[:d1i, :d1o].set(w1)
    W = W.at[d1i:d1i + d2i, d1o:d1o + d2o].set(w2)
    W = W.at[d1i + d2i:, d1o + d2o:].set(w3)
    return W


def fuse_params(params):
    """One-time fusion: block-diag projection + PE[0] bias, BN affine folded
    into linear_1, and all (1,*) vectors packed into one (4,128) array."""
    wl, bl = params["proj_l"]
    wa, ba = params["proj_a"]
    wv, bv = params["proj_v"]
    w_proj = _block_diag3(wl, wa, wv)                     # (Din_tot, Dfus)
    b_proj = jnp.concatenate(
        [bl + params["pe_l"][0:1], ba + params["pe_a"][0:1], bv + params["pe_v"][0:1]],
        axis=-1,
    )                                                     # (1, Dfus)

    c = params["clf"]
    gamma, beta = c["gamma"], c["beta"]                   # (1, Dfus)
    w1, b1 = c["w1"], c["b1"]                             # (Dfus, H), (1, H)
    # Fold BN affine: (n*gamma + beta) @ W1 + b1 = n @ (gamma^T * W1) + (beta @ W1 + b1)
    w1_f = gamma.reshape(-1, 1) * w1
    b1_f = beta @ w1 + b1
    w2_row = c["w2"].T                                    # (1, H)
    b2 = c["b2"]                                          # (1, 1)

    dfus = w_proj.shape[1]
    hdim = w1.shape[1]
    assert dfus <= 128 and hdim <= 128, "packed-param rows assume <=128 lanes"
    packed = jnp.zeros((4, 128), jnp.float32)
    packed = packed.at[0, :dfus].set(b_proj[0])
    packed = packed.at[1, :hdim].set(b1_f[0])
    packed = packed.at[2, :hdim].set(w2_row[0])
    packed = packed.at[3, 0].set(b2[0, 0])

    return {"w_proj": w_proj, "w1": w1_f, "packed": packed}


def hgcn_forward(fused_params, text_x, audio_x, video_x):
    # TODO(synk): BertTextEncoder is not defined in the source; text_x is taken
    # to already be the encoded (B, S, orig_d_l) feature sequence.
    # Only s=0 feeds the classifier (the skipped transformer's trans_seq[0]);
    # later timesteps are dead compute.  The tiny (B, 80) concat below can be
    # hoisted upstream once if this wrapper is on a latency-critical path.
    x0 = jnp.concatenate(
        [text_x[:, 0, :], audio_x[:, 0, :], video_x[:, 0, :]], axis=-1
    )
    return hgcn_fused_forward(x0, fused_params)


# ----------------------------------------------------------------------------
# Pure-JAX reference (unfused) for correctness checking
# ----------------------------------------------------------------------------
def reference_forward(params, text_x, audio_x, video_x):
    wl, bl = params["proj_l"]
    wa, ba = params["proj_a"]
    wv, bv = params["proj_v"]
    fl = text_x[:, 0, :] @ wl + bl + params["pe_l"][0:1]
    fa = audio_x[:, 0, :] @ wa + ba + params["pe_a"][0:1]
    fv = video_x[:, 0, :] @ wv + bv + params["pe_v"][0:1]
    f = jnp.concatenate([fl, fa, fv], axis=-1)
    c = params["clf"]
    mean = f.mean(axis=0, keepdims=True)
    var = ((f - mean) ** 2).mean(axis=0, keepdims=True)
    normed = (f - mean) / jnp.sqrt(var + 1e-5) * c["gamma"] + c["beta"]
    y1 = jax.nn.relu(normed @ c["w1"] + c["b1"])
    y2 = jax.nn.sigmoid(y1 @ c["w2"] + c["b2"])
    return y2 * 6.0 - 3.0


if __name__ == "__main__":
    # Small, consistent shapes.
    B, S = 2, 8
    orig_d_l, orig_d_a, orig_d_v = 32, 16, 32
    fus_d_l, fus_d_a, fus_d_v = 32, 16, 16
    fusion_dim = fus_d_l + fus_d_a + fus_d_v              # 64
    clf_hidden = 32

    key = jax.random.PRNGKey(0)
    keys = jax.random.split(key, 8)

    params = {
        "proj_l": init_linear(keys[0], orig_d_l, fus_d_l),
        "proj_a": init_linear(keys[1], orig_d_a, fus_d_a),
        "proj_v": init_linear(keys[2], orig_d_v, fus_d_v),
        "pe_l": sinusoid_pe(1024, fus_d_l),
        "pe_a": sinusoid_pe(1024, fus_d_a),
        "pe_v": sinusoid_pe(1024, fus_d_v),
        "clf": {
            "gamma": jnp.ones((1, fusion_dim), jnp.float32),
            "beta": jnp.zeros((1, fusion_dim), jnp.float32),
        },
    }
    w1, b1 = init_linear(keys[3], fusion_dim, clf_hidden)
    w2, b2 = init_linear(keys[4], clf_hidden, 1)
    params["clf"].update({"w1": w1, "b1": b1, "w2": w2, "b2": b2})

    fused_params = fuse_params(params)

    text_x = jax.random.normal(keys[5], (B, S, orig_d_l), jnp.float32)
    audio_x = jax.random.normal(keys[6], (B, S, orig_d_a), jnp.float32)
    video_x = jax.random.normal(keys[7], (B, S, orig_d_v), jnp.float32)

    out = hgcn_forward(fused_params, text_x, audio_x, video_x)
    out = jax.block_until_ready(out)
    ref = reference_forward(params, text_x, audio_x, video_x)

    assert out.shape == (B, 1)
    assert bool(jnp.all(jnp.isfinite(out)))
    # sigmoid*6-3 range (tiny slack for the approx EUP reciprocal)
    assert bool(jnp.all((out >= -3.01) & (out <= 3.01)))
    assert float(jnp.max(jnp.abs(out - ref))) < 1e-2
    print("KERNEL_OK")
</pallas_src>

<mosaic_0001>
module attributes {stable_mosaic.version = 11 : i64} {
  func.func @_hgcn_fused_kernel(%arg0: memref<2x80xf32, #tpu.memory_space<vmem>>, %arg1: memref<80x64xf32, #tpu.memory_space<vmem>>, %arg2: memref<64x32xf32, #tpu.memory_space<vmem>>, %arg3: memref<4x128xf32, #tpu.memory_space<vmem>>, %arg4: memref<1x2xf32, #tpu.memory_space<vmem>>) attributes {dimension_semantics = [], scalar_prefetch = 0 : i64, scratch_operands = 0 : i64, tpu.core_type = #tpu.core_type<tc>} {
    %c0 = arith.constant 0 : index
    %c0_0 = arith.constant 0 : index
    %0 = vector.load %arg0[%c0, %c0_0] : memref<2x80xf32, #tpu.memory_space<vmem>>, vector<2x80xf32>
    %c0_1 = arith.constant 0 : index
    %c0_2 = arith.constant 0 : index
    %1 = vector.load %arg3[%c0_1, %c0_2] : memref<4x128xf32, #tpu.memory_space<vmem>>, vector<1x64xf32>
    %c1 = arith.constant 1 : index
    %c0_3 = arith.constant 0 : index
    %2 = vector.load %arg3[%c1, %c0_3] : memref<4x128xf32, #tpu.memory_space<vmem>>, vector<1x32xf32>
    %c2 = arith.constant 2 : index
    %c0_4 = arith.constant 0 : index
    %3 = vector.load %arg3[%c2, %c0_4] : memref<4x128xf32, #tpu.memory_space<vmem>>, vector<1x32xf32>
    %c3 = arith.constant 3 : index
    %c0_5 = arith.constant 0 : index
    %4 = vector.load %arg3[%c3, %c0_5] : memref<4x128xf32, #tpu.memory_space<vmem>>, vector<1x1xf32>
    %c0_6 = arith.constant 0 : index
    %c0_7 = arith.constant 0 : index
    %5 = vector.load %arg1[%c0_6, %c0_7] : memref<80x64xf32, #tpu.memory_space<vmem>>, vector<80x64xf32>
    %cst = arith.constant dense<0.000000e+00> : vector<2x64xf32>
    %6 = tpu.matmul %0, %5, %cst {dimension_numbers = #tpu.dot_dimension_numbers<[1], [0], [0], [1], [0, 0, 1, 1], [], []>} : vector<2x80xf32>, vector<80x64xf32>, vector<2x64xf32> -> vector<2x64xf32>
    %7 = vector.broadcast %1 : vector<1x64xf32> to vector<2x64xf32>
    %8 = arith.addf %6, %7 : vector<2x64xf32>
    %cst_8 = arith.constant dense<0.000000e+00> : vector<64xf32>
    %9 = vector.multi_reduction <add>, %8, %cst_8 [0] : vector<2x64xf32> to vector<64xf32>
    %10 = vector.shape_cast %9 : vector<64xf32> to vector<1x64xf32>
    %cst_9 = arith.constant 2.000000e+00 : f32
    %11 = vector.broadcast %cst_9 : f32 to vector<1x64xf32>
    %12 = arith.divf %10, %11 : vector<1x64xf32>
    %13 = vector.broadcast %12 : vector<1x64xf32> to vector<2x64xf32>
    %14 = arith.subf %8, %13 : vector<2x64xf32>
    %15 = arith.mulf %14, %14 : vector<2x64xf32>
    %cst_10 = arith.constant dense<0.000000e+00> : vector<64xf32>
    %16 = vector.multi_reduction <add>, %15, %cst_10 [0] : vector<2x64xf32> to vector<64xf32>
    %17 = vector.shape_cast %16 : vector<64xf32> to vector<1x64xf32>
    %cst_11 = arith.constant 2.000000e+00 : f32
    %18 = vector.broadcast %cst_11 : f32 to vector<1x64xf32>
    %19 = arith.divf %17, %18 : vector<1x64xf32>
    %cst_12 = arith.constant 9.99999974E-6 : f32
    %20 = vector.broadcast %cst_12 : f32 to vector<1x64xf32>
    %21 = arith.addf %19, %20 : vector<1x64xf32>
    %22 = math.rsqrt %21 : vector<1x64xf32>
    %23 = vector.broadcast %22 : vector<1x64xf32> to vector<2x64xf32>
    %24 = arith.mulf %14, %23 : vector<2x64xf32>
    %c0_13 = arith.constant 0 : index
    %c0_14 = arith.constant 0 : index
    %25 = vector.load %arg2[%c0_13, %c0_14] : memref<64x32xf32, #tpu.memory_space<vmem>>, vector<64x32xf32>
    %cst_15 = arith.constant dense<0.000000e+00> : vector<2x32xf32>
    %26 = tpu.matmul %24, %25, %cst_15 {dimension_numbers = #tpu.dot_dimension_numbers<[1], [0], [0], [1], [0, 0, 1, 1], [], []>} : vector<2x64xf32>, vector<64x32xf32>, vector<2x32xf32> -> vector<2x32xf32>
    %27 = vector.broadcast %2 : vector<1x32xf32> to vector<2x32xf32>
    %28 = arith.addf %26, %27 : vector<2x32xf32>
    %cst_16 = arith.constant 0.000000e+00 : f32
    %29 = vector.broadcast %cst_16 : f32 to vector<2x32xf32>
    %30 = arith.maximumf %28, %29 : vector<2x32xf32>
    %cst_17 = arith.constant dense<0.000000e+00> : vector<1x2xf32>
    %31 = tpu.matmul %3, %30, %cst_17 {dimension_numbers = #tpu.dot_dimension_numbers<[1], [1], [0], [0], [0, 0, 1, 0], [], []>} : vector<1x32xf32>, vector<2x32xf32>, vector<1x2xf32> -> vector<1x2xf32>
    %32 = vector.broadcast %4 : vector<1x1xf32> to vector<1x2xf32>
    %33 = arith.addf %31, %32 : vector<1x2xf32>
    %cst_18 = arith.constant 0.000000e+00 : f32
    %34 = vector.broadcast %cst_18 : f32 to vector<1x2xf32>
    %35 = arith.subf %34, %33 : vector<1x2xf32>
    %36 = math.exp %35 : vector<1x2xf32>
    %cst_19 = arith.constant 1.000000e+00 : f32
    %37 = vector.broadcast %cst_19 : f32 to vector<1x2xf32>
    %38 = arith.addf %37, %36 : vector<1x2xf32>
    %39 = tpu.reciprocal %38 {approx = true} : vector<1x2xf32> -> vector<1x2xf32>
    %cst_20 = arith.constant 6.000000e+00 : f32
    %40 = vector.broadcast %cst_20 : f32 to vector<1x2xf32>
    %41 = arith.mulf %39, %40 : vector<1x2xf32>
    %cst_21 = arith.constant 3.000000e+00 : f32
    %42 = vector.broadcast %cst_21 : f32 to vector<1x2xf32>
    %43 = arith.subf %41, %42 : vector<1x2xf32>
    %c0_22 = arith.constant 0 : index
    %c0_23 = arith.constant 0 : index
    %44 = vector.load %arg4[%c0_22, %c0_23] : memref<1x2xf32, #tpu.memory_space<vmem>>, vector<1x2xf32>
    tpu.vector_store %arg4[%c0_22, %c0_23], %43 {strides = array<i32>} : memref<1x2xf32, #tpu.memory_space<vmem>>, vector<1x2xf32>,
    return
  }
}

</mosaic_0001>

<llo_original>
// kernel: tpu_custom_call.1
$region0: #{tpu_custom_call.1}
  #allocation0 [shape = 'u32[]', space=smem, size = 0x4, offset = 0x4, fixed_abs, tag = 'smem constant byte address 0x4 - core index']
  #allocation1 [shape = 'u32[144,128]{1,0:T(1,128)}', space=vmem, size = 0x12000, scoped, tag = 'internal scratch']
  %s0 = inlined_call_operand.vmem [shape: f32[2,80], index: 0, kind: input, shape index: {}]
  %s1 = inlined_call_operand.vmem [shape: f32[80,64], index: 1, kind: input, shape index: {}]
  %s2 = inlined_call_operand.vmem [shape: f32[64,32], index: 2, kind: input, shape index: {}]
  %s3 = inlined_call_operand.vmem [shape: f32[4,128], index: 3, kind: input, shape index: {}]
  %s4 = inlined_call_operand.hbm [shape: f32[1,2], index: 4, kind: output, shape index: {}]
  %s5 = sld [smem:[#allocation0]]
  $region26: #{tpu_custom_call.1} parent=0
    _
  %s7 = ssub.s32 1, %s5
  %s8 = scalar_select 0, %s7, %s5
  $region1: #{tpu_custom_call.1} parent=0
    #allocation2 [shape = 'u8[512]{0}', space=vmem, size = 0x400, scoped, tag = 'output window, operand 0, single buffered']
    #allocation3 [shape = 's32[1]{0}', space=sflag, size = 0x4, scoped, tag = 'scoped memory for tpu_custom_call.1']
    %9 = vsyncpa [#allocation3], 0
    // Predicated region
    $region2: #{tpu_custom_call.1} parent=1 // pred_check
      _
    $region3: #{tpu_custom_call.1} parent=1 // pred_check_branch
      %11 = sbr.rel (0) target = $region5
    $region4: #{tpu_custom_call.1} parent=1 // pred_region
      _
    $region5: #{tpu_custom_call.1} parent=1 // pred_fallthru
      _
    // Predicated region
    $region6: #{tpu_custom_call.1} parent=1 // pred_check
      _
    $region7: #{tpu_custom_call.1} parent=1 // pred_check_branch
      %13 = sbr.rel (0) target = $region9
    $region8: #{tpu_custom_call.1} parent=1 // pred_region
      _
    $region9: #{tpu_custom_call.1} parent=1 // pred_fallthru
      _
    // Predicated region
    $region10: #{tpu_custom_call.1} parent=1 // pred_check
      _
    $region11: #{tpu_custom_call.1} parent=1 // pred_check_branch
      %15 = sbr.rel (0) target = $region13
    $region12: #{tpu_custom_call.1} parent=1 // pred_region
      _
    $region13: #{tpu_custom_call.1} parent=1 // pred_fallthru
      _
    // Predicated region
    $region14: #{tpu_custom_call.1} parent=1 // pred_check
      _
    $region15: #{tpu_custom_call.1} parent=1 // pred_check_branch
      %17 = sbr.rel (0) target = $region17
    $region16: #{tpu_custom_call.1} parent=1 // pred_region
      _
    $region17: #{tpu_custom_call.1} parent=1 // pred_fallthru
      _
    %v18 = vld [vmem:[%s0] sm:$0x3]
    %v19 = vld [vmem:[%s3] sm:$0x1]
    %v20 = vld [vmem:[%s3 + $0x1] sm:$0x1]
    %v21 = vld [vmem:[%s3 + $0x2] sm:$0x1]
    %v22 = vld [vmem:[%s3 + $0x3] sm:$0x1]
    %v23 = vld [vmem:[%s1] sm:$0xff]
    %v24 = vld [vmem:[%s1 + $0x8] sm:$0xff]
    %v25 = vld [vmem:[%s1 + $0x10] sm:$0xff]
    %v26 = vld [vmem:[%s1 + $0x18] sm:$0xff]
    %v27 = vld [vmem:[%s1 + $0x20] sm:$0xff]
    %v28 = vld [vmem:[%s1 + $0x28] sm:$0xff]
    %v29 = vld [vmem:[%s1 + $0x30] sm:$0xff]
    %v30 = vld [vmem:[%s1 + $0x38] sm:$0xff]
    %v31 = vld [vmem:[%s1 + $0x40] sm:$0xff]
    %v32 = vld [vmem:[%s1 + $0x48] sm:$0xff]
    %v33 = vlaneseq
    %v34 = vshrl.u32 %v33, 7
    %v35 = vsub.s32 0, %v34
    %v36 = vrot.slane %v19, %v35
    %vm37 = vcmask 654336
    %v39 = vsel %vm37, %v18, 0
    %41 = vmatprep.subr.mxu0 0.0
    %42 = vmatpush1.msra.mxu0 0.0
    %43 = vmatprep.subr.mxu0 0.0
    %44 = vmatpush1.msra.mxu0 0.0
    %45 = vmatprep.subr.mxu0 0.0
    %46 = vmatpush1.msra.mxu0 0.0
    %47 = vmatprep.subr.mxu0 0.0
    %48 = vmatpush1.msra.mxu0 0.0
    %49 = vmatprep.subr.mxu0 0.0
    %50 = vmatpush1.msra.mxu0 0.0
    %51 = vmatprep.subr.mxu0 0.0
    %52 = vmatpush1.msra.mxu0 0.0
    %53 = vmatprep.subr.mxu0 0.0
    %54 = vmatpush1.msra.mxu0 %v32
    %55 = vmatprep.subr.mxu0 0.0
    %56 = vmatpush1.msra.mxu0 %v31
    %57 = vmatprep.subr.mxu0 0.0
    %58 = vmatpush1.msra.mxu0 %v30
    %59 = vmatprep.subr.mxu0 0.0
    %60 = vmatpush1.msra.mxu0 %v29
    %61 = vmatprep.subr.mxu0 0.0
    %62 = vmatpush1.msra.mxu0 %v28
    %63 = vmatprep.subr.mxu0 0.0
    %64 = vmatpush1.msra.mxu0 %v27
    %65 = vmatprep.subr.mxu0 0.0
    %66 = vmatpush1.msra.mxu0 %v26
    %67 = vmatprep.subr.mxu0 0.0
    %68 = vmatpush1.msra.mxu0 %v25
    %69 = vmatprep.subr.mxu0 0.0
    %70 = vmatpush1.msra.mxu0 %v24
    %71 = vmatprep.subr.mxu0 0.0
    %72 = vmatpush1.msra.mxu0 %v23
    %73 = vmatprep.subr.mxu0 0.0
    %74 = vmatpush2.msra.mxu0 0.0
    %75 = vmatprep.subr.mxu0 0.0
    %76 = vmatpush2.msra.mxu0 0.0
    %77 = vmatprep.subr.mxu0 0.0
    %78 = vmatpush2.msra.mxu0 0.0
    %79 = vmatprep.subr.mxu0 0.0
    %80 = vmatpush2.msra.mxu0 0.0
    %81 = vmatprep.subr.mxu0 0.0
    %82 = vmatpush2.msra.mxu0 0.0
    %83 = vmatprep.subr.mxu0 0.0
    %84 = vmatpush2.msra.mxu0 0.0
    %85 = vmatprep.subr.mxu0 0.0
    %86 = vmatpush2.msra.mxu0 0.0
    %87 = vmatprep.subr.mxu0 0.0
    %88 = vmatpush2.msra.mxu0 0.0
    %89 = vmatprep.subr.mxu0 0.0
    %90 = vmatpush2.msra.mxu0 0.0
    %91 = vmatprep.subr.mxu0 0.0
    %92 = vmatpush2.msra.mxu0 0.0
    %93 = vmatprep.subr.mxu0 0.0
    %94 = vmatpush2.msra.mxu0 0.0
    %95 = vmatprep.subr.mxu0 0.0
    %96 = vmatpush2.msra.mxu0 0.0
    %97 = vmatprep.subr.mxu0 0.0
    %98 = vmatpush2.msra.mxu0 0.0
    %99 = vmatprep.subr.mxu0 0.0
    %100 = vmatpush2.msra.mxu0 0.0
    %101 = vmatprep.subr.mxu0 0.0
    %102 = vmatpush2.msra.mxu0 0.0
    %103 = vmatprep.subr.mxu0 0.0
    %104 = vmatpush2.msra.mxu0 0.0
    %105 = vmatprep.mubr.f32.mxu0 0.0
    %106 = vmatmul.mubr.f32.gmra.mxu0 %v39
    %v107 = vpop.f32.mrf.mxu0
    %v108 = vadd.f32 %v36, %v107
    %v109 = vpop.f32.mrf.mxu0
    %110 = vdwg.mxu0
    %vm111 = vcmask 517120
    %v112 = vsel %vm111, %v108, 0.0
    %v113 = vrot.slane %v112, 4
    %v114 = vadd.f32 %v112, %v113
    %v115 = vrot.slane %v114, 2
    %v116 = vadd.f32 %v114, %v115
    %v117 = vrot.slane %v116, 1
    %v118 = vadd.f32 %v116, %v117
    %v119 = vrcp.pop 2.0
    %v120 = vmul.f32 %v118, %v119
    %v121 = vsub.f32 %v108, %v120
    %v122 = vmul.f32 %v121, %v121
    %v123 = vsel %vm111, %v122, 0.0
    %v124 = vrot.slane %v123, 4
    %v125 = vadd.f32 %v123, %v124
    %v126 = vrot.slane %v125, 2
    %v127 = vadd.f32 %v125, %v126
    %v128 = vrot.slane %v127, 1
    %v129 = vadd.f32 %v127, %v128
    %v130 = vmul.f32 %v129, %v119
    %v131 = vadd.f32 %v130, 1e-05
    %v132 = vrsqrt.pop %v131
    %v133 = vmul.f32 %v121, %v132
    %v134 = vld [vmem:[%s2] sm:$0xff]
    %v135 = vld [vmem:[%s2 + $0x8] sm:$0xff]
    %v136 = vld [vmem:[%s2 + $0x10] sm:$0xff]
    %v137 = vld [vmem:[%s2 + $0x18] sm:$0xff]
    %v138 = vld [vmem:[%s2 + $0x20] sm:$0xff]
    %v139 = vld [vmem:[%s2 + $0x28] sm:$0xff]
    %v140 = vld [vmem:[%s2 + $0x30] sm:$0xff]
    %v141 = vld [vmem:[%s2 + $0x38] sm:$0xff]
    %v142 = vlaneseq
    %v143 = vshrl.u32 %v142, 7
    %v144 = vsub.s32 0, %v143
    %v145 = vrot.slane %v20, %v144
    %vm146 = vcmask 523264
    %v148 = vsel %vm146, %v133, 0
    %150 = vmatprep.subr.mxu0 0.0
    %151 = vmatpush1.msra.mxu0 0.0
    %152 = vmatprep.subr.mxu0 0.0
    %153 = vmatpush1.msra.mxu0 0.0
    %154 = vmatprep.subr.mxu0 0.0
    %155 = vmatpush1.msra.mxu0 0.0
    %156 = vmatprep.subr.mxu0 0.0
    %157 = vmatpush1.msra.mxu0 0.0
    %158 = vmatprep.subr.mxu0 0.0
    %159 = vmatpush1.msra.mxu0 0.0
    %160 = vmatprep.subr.mxu0 0.0
    %161 = vmatpush1.msra.mxu0 0.0
    %162 = vmatprep.subr.mxu0 0.0
    %163 = vmatpush1.msra.mxu0 0.0
    %164 = vmatprep.subr.mxu0 0.0
    %165 = vmatpush1.msra.mxu0 0.0
    %166 = vmatprep.subr.mxu0 0.0
    %167 = vmatpush1.msra.mxu0 %v141
    %168 = vmatprep.subr.mxu0 0.0
    %169 = vmatpush1.msra.mxu0 %v140
    %170 = vmatprep.subr.mxu0 0.0
    %171 = vmatpush1.msra.mxu0 %v139
    %172 = vmatprep.subr.mxu0 0.0
    %173 = vmatpush1.msra.mxu0 %v138
    %174 = vmatprep.subr.mxu0 0.0
    %175 = vmatpush1.msra.mxu0 %v137
    %176 = vmatprep.subr.mxu0 0.0
    %177 = vmatpush1.msra.mxu0 %v136
    %178 = vmatprep.subr.mxu0 0.0
    %179 = vmatpush1.msra.mxu0 %v135
    %180 = vmatprep.subr.mxu0 0.0
    %181 = vmatpush1.msra.mxu0 %v134
    %182 = vmatprep.subr.mxu0 0.0
    %183 = vmatpush2.msra.mxu0 0.0
    %184 = vmatprep.subr.mxu0 0.0
    %185 = vmatpush2.msra.mxu0 0.0
    %186 = vmatprep.subr.mxu0 0.0
    %187 = vmatpush2.msra.mxu0 0.0
    %188 = vmatprep.subr.mxu0 0.0
    %189 = vmatpush2.msra.mxu0 0.0
    %190 = vmatprep.subr.mxu0 0.0
    %191 = vmatpush2.msra.mxu0 0.0
    %192 = vmatprep.subr.mxu0 0.0
    %193 = vmatpush2.msra.mxu0 0.0
    %194 = vmatprep.subr.mxu0 0.0
    %195 = vmatpush2.msra.mxu0 0.0
    %196 = vmatprep.subr.mxu0 0.0
    %197 = vmatpush2.msra.mxu0 0.0
    %198 = vmatprep.subr.mxu0 0.0
    %199 = vmatpush2.msra.mxu0 0.0
    %200 = vmatprep.subr.mxu0 0.0
    %201 = vmatpush2.msra.mxu0 0.0
    %202 = vmatprep.subr.mxu0 0.0
    %203 = vmatpush2.msra.mxu0 0.0
    %204 = vmatprep.subr.mxu0 0.0
    %205 = vmatpush2.msra.mxu0 0.0
    %206 = vmatprep.subr.mxu0 0.0
    %207 = vmatpush2.msra.mxu0 0.0
    %208 = vmatprep.subr.mxu0 0.0
    %209 = vmatpush2.msra.mxu0 0.0
    %210 = vmatprep.subr.mxu0 0.0
    %211 = vmatpush2.msra.mxu0 0.0
    %212 = vmatprep.subr.mxu0 0.0
    %213 = vmatpush2.msra.mxu0 0.0
    %214 = vmatprep.mubr.f32.mxu0 0.0
    %215 = vmatmul.mubr.f32.gmra.mxu0 %v148
    %v216 = vpop.f32.mrf.mxu0
    %v217 = vadd.f32 %v145, %v216
    %v218 = vpop.f32.mrf.mxu0
    %219 = vdwg.mxu0
    %v220 = vmax.f32 %v217, 0.0
    %222 = vset.pattern.permute.xlu0 0
    %223 = vperm.xlu0 %222, %v22
    %v224 = vpop.permute.xlu0 %223
    %vm226 = vcmask 261120
    %v228 = vsel %vm226, %v21, 0
    %v231 = vsel %vm226, %v220, 0
    %233 = vmatprep.subr.mxu0 0.0
    %234 = vmatpush1.xpose.msra.mxu0 0.0
    %235 = vmatprep.subr.mxu0 0.0
    %236 = vmatpush1.xpose.msra.mxu0 0.0
    %237 = vmatprep.subr.mxu0 0.0
    %238 = vmatpush1.xpose.msra.mxu0 0.0
    %239 = vmatprep.subr.mxu0 0.0
    %240 = vmatpush1.xpose.msra.mxu0 0.0
    %241 = vmatprep.subr.mxu0 0.0
    %242 = vmatpush1.xpose.msra.mxu0 0.0
    %243 = vmatprep.subr.mxu0 0.0
    %244 = vmatpush1.xpose.msra.mxu0 0.0
    %245 = vmatprep.subr.mxu0 0.0
    %246 = vmatpush1.xpose.msra.mxu0 0.0
    %247 = vmatprep.subr.mxu0 0.0
    %248 = vmatpush1.xpose.msra.mxu0 0.0
    %249 = vmatprep.subr.mxu0 0.0
    %250 = vmatpush1.xpose.msra.mxu0 0.0
    %251 = vmatprep.subr.mxu0 0.0
    %252 = vmatpush1.xpose.msra.mxu0 0.0
    %253 = vmatprep.subr.mxu0 0.0
    %254 = vmatpush1.xpose.msra.mxu0 0.0
    %255 = vmatprep.subr.mxu0 0.0
    %256 = vmatpush1.xpose.msra.mxu0 0.0
    %257 = vmatprep.subr.mxu0 0.0
    %258 = vmatpush1.xpose.msra.mxu0 0.0
    %259 = vmatprep.subr.mxu0 0.0
    %260 = vmatpush1.xpose.msra.mxu0 0.0
    %261 = vmatprep.subr.mxu0 0.0
    %262 = vmatpush1.xpose.msra.mxu0 0.0
    %263 = vmatprep.subr.mxu0 0.0
    %264 = vmatpush1.xpose.msra.mxu0 %v231
    %265 = vmatprep.subr.mxu0 0.0
    %266 = vmatpush2.xpose.msra.mxu0 0.0
    %267 = vmatprep.subr.mxu0 0.0
    %268 = vmatpush2.xpose.msra.mxu0 0.0
    %269 = vmatprep.subr.mxu0 0.0
    %270 = vmatpush2.xpose.msra.mxu0 0.0
    %271 = vmatprep.subr.mxu0 0.0
    %272 = vmatpush2.xpose.msra.mxu0 0.0
    %273 = vmatprep.subr.mxu0 0.0
    %274 = vmatpush2.xpose.msra.mxu0 0.0
    %275 = vmatprep.subr.mxu0 0.0
    %276 = vmatpush2.xpose.msra.mxu0 0.0
    %277 = vmatprep.subr.mxu0 0.0
    %278 = vmatpush2.xpose.msra.mxu0 0.0
    %279 = vmatprep.subr.mxu0 0.0
    %280 = vmatpush2.xpose.msra.mxu0 0.0
    %281 = vmatprep.subr.mxu0 0.0
    %282 = vmatpush2.xpose.msra.mxu0 0.0
    %283 = vmatprep.subr.mxu0 0.0
    %284 = vmatpush2.xpose.msra.mxu0 0.0
    %285 = vmatprep.subr.mxu0 0.0
    %286 = vmatpush2.xpose.msra.mxu0 0.0
    %287 = vmatprep.subr.mxu0 0.0
    %288 = vmatpush2.xpose.msra.mxu0 0.0
    %289 = vmatprep.subr.mxu0 0.0
    %290 = vmatpush2.xpose.msra.mxu0 0.0
    %291 = vmatprep.subr.mxu0 0.0
    %292 = vmatpush2.xpose.msra.mxu0 0.0
    %293 = vmatprep.subr.mxu0 0.0
    %294 = vmatpush2.xpose.msra.mxu0 0.0
    %295 = vmatprep.subr.mxu0 0.0
    %296 = vmatpush2.xpose.msra.mxu0 0.0
    %297 = vmatprep.mubr.f32.mxu0 0.0
    %298 = vmatmul.mubr.f32.gmra.mxu0 %v228
    %v299 = vpop.f32.mrf.mxu0
    %v300 = vadd.f32 %v224, %v299
    %v301 = vpop.f32.mrf.mxu0
    %302 = vdwg.mxu0
    %v303 = vsub.f32 0.0, %v300
    %v304 = vmul.f32 %v303, 1.442695
    %v305 = vpow.pop %v304
    %v306 = vadd.f32 %v305, 1.0
    %v307 = vrcp.pop %v306
    %v308 = vmul.f32 %v307, 6.0
    %v309 = vsub.f32 %v308, 3.0
    %vm310 = vcmask 8192
    %311 = vst.msk [vmem:[#allocation2] sm:$0x1] %vm310, %v309
    // Predicated region
    $region18: #{tpu_custom_call.1} parent=1 // pred_check
      _
    $region19: #{tpu_custom_call.1} parent=1 // pred_check_branch
      %313 = sbr.rel (0) target = $region21
    $region20: #{tpu_custom_call.1} parent=1 // pred_region
      %s315 = ssub.s32 16, 16
      %316 = vsyncadd [#allocation3], %s315
      %s318 = sshll.u32 [#allocation2], 4
      %s319 = int_to_ptr.vmem [resolvable:$true] %s318
      %321 = dma.vmem_to_hbm [thread:$0]  %s319, 16, %s4, [#allocation3]
    $region21: #{tpu_custom_call.1} parent=1 // pred_fallthru
      _
    // Predicated region
    $region22: #{tpu_custom_call.1} parent=1 // pred_check
      _
    $region23: #{tpu_custom_call.1} parent=1 // pred_check_branch
      %323 = sbr.rel (0) target = $region25
    $region24: #{tpu_custom_call.1} parent=1 // pred_region
      %324 = dma.done [#allocation3], 16
    $region25: #{tpu_custom_call.1} parent=1 // pred_fallthru
      _
    %325 = vsyncpa [#allocation3], 1

</llo_original>
